<compile_context>
chip_gen: v7x
topology: tpu7x:2x2x1
jax: 0.10.0
libtpu: 0.0.40
codegen_flags: <defaults>
</compile_context>

<pallas_src>
import functools
import math

import jax
import jax.numpy as jnp
from jax.experimental import pallas as pl
from jax.experimental.pallas import tpu as pltpu

LANE = 128
BLOCK_ROWS = 4096          # rows of 128 lanes per grid step (f32 tile = 2 MiB)
MIN_PALLAS_ELEMS = 1 << 16  # below this, fused XLA beats kernel launch overhead


def _num_tensorcores():
    """TensorCores a single Pallas program can shard a grid axis across."""
    # TODO(synk): replace the device-kind sniff with a core-count query if/when
    # pltpu.get_tpu_info() exposes it.
    try:
        dev = jax.devices()[0]
        kind = (getattr(dev, "device_kind", "") or "").lower()
        if dev.platform == "tpu" and "v7" in kind:
            return 2
    except Exception:
        pass
    return 1


def _sublane_for(*dtypes):
    """Sublane tile for the widest packing among the given dtypes (8/16/32)."""
    sub = 8
    for dt in dtypes:
        itemsize = jnp.dtype(dt).itemsize
        sub = max(sub, 32 // max(1, min(4, itemsize)))
    return sub


def _choose_block_rows(rows, sub):
    """Largest legal block row count <= BLOCK_ROWS (multiple of `sub`)."""
    if rows <= sub:
        return rows                              # block == full dim (always legal)
    cap = max(sub, (BLOCK_ROWS // sub) * sub)
    if rows % sub == 0:
        return min(cap, rows)
    return min(cap, (rows // sub) * sub)


def _per_row_weight(weight, full_shape):
    """Return a (rows, 1) per-row weight if `weight` is a trailing-singleton
    broadcast of `full_shape` whose broadcast group is a whole number of
    128-lane rows (e.g. a (B,K,1,1) per-joint mask with H*W % 128 == 0).
    Otherwise return None (caller streams the full weight)."""
    if weight.ndim != len(full_shape):
        return None
    shp = tuple(weight.shape)
    j = len(shp)
    while j > 0 and shp[j - 1] == 1:
        j -= 1
    if shp[:j] != tuple(full_shape[:j]):
        return None
    group = math.prod(full_shape[j:]) if j < len(full_shape) else 1
    if group < LANE or group % LANE != 0:
        return None
    rows = math.prod(full_shape) // LANE
    reps = group // LANE
    return jnp.repeat(jnp.ravel(weight), reps).reshape(rows, 1)


def _mse_sum_kernel(pred_ref, gt_ref, w_ref, out_ref, acc_ref, *,
                    rows_valid, blocks_per_split, need_mask):
    c = pl.program_id(0)   # core-split axis
    i = pl.program_id(1)   # row-block within this split (reduction axis)
    block_rows = pred_ref.shape[0]

    @pl.when(i == 0)
    def _():
        acc_ref[...] = jnp.zeros_like(acc_ref)

    # w_ref is (block_rows, LANE) for full weights or (block_rows, 1) for the
    # broadcast fast path -- jnp broadcasting handles both.
    w = w_ref[...].astype(jnp.float32)
    p = pred_ref[...].astype(jnp.float32)
    g = gt_ref[...].astype(jnp.float32)
    d = (p - g) * w            # folded weighting (<=1 ULP vs pred*w - gt*w)
    dd = d * d

    if need_mask:
        # Logical (unclamped) block id -> global starting row of this tile.
        block_start = (c * blocks_per_split + i) * block_rows
        is_interior = block_start + block_rows <= rows_valid

        @pl.when(is_interior)
        def _():
            # Interior blocks skip the iota/compare/select entirely.
            acc_ref[...] += dd.reshape(-1, 8, LANE).sum(axis=0)

        @pl.when(jnp.logical_not(is_interior))
        def _():
            row_ids = block_start + jax.lax.broadcasted_iota(
                jnp.int32, dd.shape, 0)
            # select (not multiply): NaN-safe against stale VMEM in OOB rows.
            ddm = jnp.where(row_ids < rows_valid, dd, 0.0)
            acc_ref[...] += ddm.reshape(-1, 8, LANE).sum(axis=0)
    else:
        acc_ref[...] += dd.reshape(-1, 8, LANE).sum(axis=0)

    @pl.when(i == pl.num_programs(1) - 1)
    def _():
        # Ship the (8,128) partial-sum tile; the final reduce happens in XLA.
        out_ref[...] = acc_ref[...].reshape(1, 8, LANE)


def mse_loss_pallas(pred_hm, gt_hm, gt_hm_weight):
    """0.5 * MSE(pred_hm * w, gt_hm * w), mean over all elements.

    `gt_hm_weight` may be the full tensor or any shape torch-broadcastable to
    pred_hm.shape (e.g. a (B,K,1,1) per-joint mask)."""
    full_shape = tuple(pred_hm.shape)
    assert gt_hm.shape == pred_hm.shape
    n_elem = math.prod(full_shape)
    assert n_elem > 0
    scale = jnp.float32(0.5 / n_elem)

    # Small inputs: fixed pallas launch + per-step overhead exceeds the whole
    # fused-XLA computation; just evaluate the expression directly.
    if n_elem < MIN_PALLAS_ELEMS:
        pf = pred_hm.astype(jnp.float32)
        gf = gt_hm.astype(jnp.float32)
        wf = gt_hm_weight.astype(jnp.float32)
        d = pf * wf - gf * wf
        return (0.5 * jnp.mean(d * d)).astype(jnp.float32)

    # Broadcast-weight fast path (stream only a (rows,1) per-row weight).
    w_rows2 = _per_row_weight(gt_hm_weight, full_shape)
    if w_rows2 is None and tuple(gt_hm_weight.shape) != full_shape:
        gt_hm_weight = jnp.broadcast_to(gt_hm_weight, full_shape)

    rem = n_elem % LANE
    main = n_elem - rem
    rows = main // LANE

    if rem:
        # TODO(synk): for rem != 0 the prefix slice below materializes HBM
        # copies of the main slabs; acceptable because heatmap sizes are
        # normally 128-aligned -- a flat 1-D BlockSpec would avoid it.
        pt = jnp.ravel(pred_hm)[main:].astype(jnp.float32)
        gtt = jnp.ravel(gt_hm)[main:].astype(jnp.float32)
        wt = jnp.ravel(gt_hm_weight)[main:].astype(jnp.float32)
        dt = (pt - gtt) * wt
        tail = jnp.sum(dt * dt)
    else:
        tail = jnp.float32(0.0)

    if rows == 0:
        return (tail * scale).astype(jnp.float32)

    def _as_rows(x):
        x = jnp.ravel(x)                  # free for contiguous NCHW
        if rem:
            x = x[:main]
        return x.reshape(rows, LANE)      # native dtype; cast happens on-chip

    pred2 = _as_rows(pred_hm)
    gt2 = _as_rows(gt_hm)
    w2 = w_rows2 if w_rows2 is not None else _as_rows(gt_hm_weight)

    sub = _sublane_for(pred2.dtype, gt2.dtype, w2.dtype)
    block_rows = _choose_block_rows(rows, sub)
    n_blocks = -(-rows // block_rows)
    num_splits = min(_num_tensorcores(), n_blocks)
    blocks_per_split = -(-n_blocks // num_splits)
    covered = num_splits * blocks_per_split * block_rows
    need_mask = covered != rows
    need_clamp = num_splits * blocks_per_split > n_blocks

    kernel = functools.partial(
        _mse_sum_kernel,
        rows_valid=rows,
        blocks_per_split=blocks_per_split,
        need_mask=need_mask,
    )

    def in_map(c, i):
        b = c * blocks_per_split + i
        if need_clamp:
            # Short core re-reads a valid block; its rows are masked to 0.
            b = jnp.minimum(b, n_blocks - 1)
        return (b, 0)

    w_block = (block_rows, 1) if w_rows2 is not None else (block_rows, LANE)
    in_specs = [
        pl.BlockSpec((block_rows, LANE), in_map),
        pl.BlockSpec((block_rows, LANE), in_map),
        pl.BlockSpec(w_block, in_map),
    ]
    out_spec = pl.BlockSpec((1, 8, LANE), lambda c, i: (c, 0, 0))

    bytes_accessed = int(
        pred2.size * pred2.dtype.itemsize
        + gt2.size * gt2.dtype.itemsize
        + w2.size * w2.dtype.itemsize
        + num_splits * 8 * LANE * 4)
    cost = pl.CostEstimate(flops=5 * n_elem, transcendentals=0,
                           bytes_accessed=bytes_accessed)

    def _call(axis0_sem):
        return pl.pallas_call(
            kernel,
            out_shape=jax.ShapeDtypeStruct((num_splits, 8, LANE), jnp.float32),
            grid_spec=pltpu.PrefetchScalarGridSpec(
                num_scalar_prefetch=0,
                grid=(num_splits, blocks_per_split),
                in_specs=in_specs,
                out_specs=out_spec,
                scratch_shapes=[pltpu.VMEM((8, LANE), jnp.float32)],
            ),
            compiler_params=pltpu.CompilerParams(
                dimension_semantics=(axis0_sem, pltpu.ARBITRARY),
                vmem_limit_bytes=48 * 1024 * 1024,
            ),
            cost_estimate=cost,
        )(pred2, gt2, w2)

    if num_splits > 1:
        try:
            out = _call(pltpu.CORE_PARALLEL)   # real 2-TC sharding on v7x
        except Exception:
            out = _call(pltpu.PARALLEL)        # safe fallback
    else:
        out = _call(pltpu.ARBITRARY)

    return ((jnp.sum(out) + tail) * scale).astype(jnp.float32)


def mse_loss_ref(pred_hm, gt_hm, gt_hm_weight):
    p = pred_hm * gt_hm_weight
    g = gt_hm * gt_hm_weight
    return 0.5 * jnp.mean((p - g) ** 2)


def _check(name, loss, ref, rtol=1e-5, atol=1e-6):
    jax.block_until_ready(loss)
    assert jnp.allclose(loss, ref, rtol=rtol, atol=atol), (name, loss, ref)


if __name__ == "__main__":
    key = jax.random.PRNGKey(0)

    # 1) Realistic heatmap (COCO-style), full-shape weight -> general Pallas path.
    k1, k2, k3, key = jax.random.split(key, 4)
    B, K, H, W = 2, 17, 64, 48
    pred_hm = jax.random.normal(k1, (B, K, H, W), dtype=jnp.float32)
    gt_hm = jax.random.normal(k2, (B, K, H, W), dtype=jnp.float32)
    w_joint = (jax.random.uniform(k3, (B, K, 1, 1)) > 0.2).astype(jnp.float32)
    w_full = jnp.broadcast_to(w_joint, (B, K, H, W))
    _check("general", mse_loss_pallas(pred_hm, gt_hm, w_full),
           mse_loss_ref(pred_hm, gt_hm, w_full))

    # 2) Per-joint (B,K,1,1) weight -> broadcast fast path (2 HBM streams).
    k1, k2, k3, key = jax.random.split(key, 4)
    B, K, H, W = 2, 16, 64, 64
    p2 = jax.random.normal(k1, (B, K, H, W), dtype=jnp.float32)
    g2 = jax.random.normal(k2, (B, K, H, W), dtype=jnp.float32)
    wj2 = (jax.random.uniform(k3, (B, K, 1, 1)) > 0.3).astype(jnp.float32)
    _check("bcast-weight", mse_loss_pallas(p2, g2, wj2),
           mse_loss_ref(p2, g2, wj2))

    # 3) Rows not a multiple of the sublane tile -> boundary-mask path.
    k1, k2, k3, key = jax.random.split(key, 4)
    shp = (2, 7, 88, 104)   # 128128 elems -> 1001 rows of 128
    p3 = jax.random.normal(k1, shp, dtype=jnp.float32)
    g3 = jax.random.normal(k2, shp, dtype=jnp.float32)
    w3 = (jax.random.uniform(k3, shp) > 0.3).astype(jnp.float32)
    _check("mask", mse_loss_pallas(p3, g3, w3), mse_loss_ref(p3, g3, w3))

    # 4) n_elem not a multiple of 128 -> jnp tail + masked kernel path.
    k1, k2, k3, key = jax.random.split(key, 4)
    shp = (2, 7, 88, 103)   # 126896 elems, rem = 48
    p4 = jax.random.normal(k1, shp, dtype=jnp.float32)
    g4 = jax.random.normal(k2, shp, dtype=jnp.float32)
    w4 = (jax.random.uniform(k3, shp) > 0.3).astype(jnp.float32)
    _check("tail", mse_loss_pallas(p4, g4, w4), mse_loss_ref(p4, g4, w4))

    # 5) bf16 inputs (dtype-aware 16-row sublane tiling, on-chip cast).
    k1, k2, k3, key = jax.random.split(key, 4)
    shp = (2, 16, 64, 64)
    p5 = jax.random.normal(k1, shp, dtype=jnp.float32).astype(jnp.bfloat16)
    g5 = jax.random.normal(k2, shp, dtype=jnp.float32).astype(jnp.bfloat16)
    w5 = (jax.random.uniform(k3, shp) > 0.3).astype(jnp.bfloat16)
    ref5 = mse_loss_ref(p5.astype(jnp.float32), g5.astype(jnp.float32),
                        w5.astype(jnp.float32))
    _check("bf16", mse_loss_pallas(p5, g5, w5), ref5, rtol=1e-3, atol=1e-5)

    # 6) Tiny module-sized case (batch=2, joints=4, 16x16) -> fused-jnp fallback.
    k1, k2, k3, key = jax.random.split(key, 4)
    B, K, H, W = 2, 4, 16, 16
    p6 = jax.random.normal(k1, (B, K, H, W), dtype=jnp.float32)
    g6 = jax.random.normal(k2, (B, K, H, W), dtype=jnp.float32)
    wj6 = (jax.random.uniform(k3, (B, K, 1, 1)) > 0.2).astype(jnp.float32)
    w6 = jnp.broadcast_to(wj6, (B, K, H, W))
    _check("small", mse_loss_pallas(p6, g6, w6), mse_loss_ref(p6, g6, w6))

    print("KERNEL_OK")
</pallas_src>

<mosaic_0001>
module attributes {stable_mosaic.version = 11 : i64} {
  func.func @_mse_sum_kernel(%arg0: i32, %arg1: i32, %arg2: memref<816x128xf32, #tpu.memory_space<vmem>>, %arg3: memref<816x128xf32, #tpu.memory_space<vmem>>, %arg4: memref<816x128xf32, #tpu.memory_space<vmem>>, %arg5: memref<1x8x128xf32, #tpu.memory_space<vmem>>, %arg6: memref<8x128xf32, #tpu.memory_space<vmem>>) attributes {dimension_semantics = [#tpu.dimension_semantics<arbitrary>, #tpu.dimension_semantics<arbitrary>], iteration_bounds = array<i64: 1, 1>, scalar_prefetch = 0 : i64, scratch_operands = 1 : i64, tpu.core_type = #tpu.core_type<tc>, window_params = [{transform_indices = @transform_0, window_bounds = array<i64: 816, 128>}, {transform_indices = @transform_1, window_bounds = array<i64: 816, 128>}, {transform_indices = @transform_2, window_bounds = array<i64: 816, 128>}, {transform_indices = @transform_3, window_bounds = array<i64: 1, 8, 128>}]} {
    %c0_i32 = arith.constant 0 : i32
    %0 = arith.cmpi eq, %arg1, %c0_i32 : i32
    %1 = arith.extui %0 : i1 to i32
    %c0_i32_0 = arith.constant 0 : i32
    %2 = arith.cmpi ne, %1, %c0_i32_0 : i32
    scf.if %2 {
      %cst_12 = arith.constant 0.000000e+00 : f32
      %17 = vector.broadcast %cst_12 : f32 to vector<8x128xf32>
      %c0_13 = arith.constant 0 : index
      %c0_14 = arith.constant 0 : index
      %18 = vector.load %arg6[%c0_13, %c0_14] : memref<8x128xf32, #tpu.memory_space<vmem>>, vector<8x128xf32>
      tpu.vector_store %arg6[%c0_13, %c0_14], %17 {strides = array<i32>} : memref<8x128xf32, #tpu.memory_space<vmem>>, vector<8x128xf32>,
    } else {
    }
    %c0 = arith.constant 0 : index
    %c0_1 = arith.constant 0 : index
    %3 = vector.load %arg4[%c0, %c0_1] : memref<816x128xf32, #tpu.memory_space<vmem>>, vector<816x128xf32>
    %c0_2 = arith.constant 0 : index
    %c0_3 = arith.constant 0 : index
    %4 = vector.load %arg2[%c0_2, %c0_3] : memref<816x128xf32, #tpu.memory_space<vmem>>, vector<816x128xf32>
    %c0_4 = arith.constant 0 : index
    %c0_5 = arith.constant 0 : index
    %5 = vector.load %arg3[%c0_4, %c0_5] : memref<816x128xf32, #tpu.memory_space<vmem>>, vector<816x128xf32>
    %6 = arith.subf %4, %5 : vector<816x128xf32>
    %7 = arith.mulf %6, %3 : vector<816x128xf32>
    %8 = arith.mulf %7, %7 : vector<816x128xf32>
    %c0_6 = arith.constant 0 : index
    %c0_7 = arith.constant 0 : index
    %9 = vector.load %arg6[%c0_6, %c0_7] : memref<8x128xf32, #tpu.memory_space<vmem>>, vector<8x128xf32>
    %10 = vector.shape_cast %8 : vector<816x128xf32> to vector<102x8x128xf32>
    %cst = arith.constant dense<0.000000e+00> : vector<8x128xf32>
    %11 = vector.multi_reduction <add>, %10, %cst [0] : vector<102x8x128xf32> to vector<8x128xf32>
    %12 = arith.addf %9, %11 : vector<8x128xf32>
    %c0_8 = arith.constant 0 : index
    %c0_9 = arith.constant 0 : index
    %13 = vector.load %arg6[%c0_8, %c0_9] : memref<8x128xf32, #tpu.memory_space<vmem>>, vector<8x128xf32>
    tpu.vector_store %arg6[%c0_8, %c0_9], %12 {strides = array<i32>} : memref<8x128xf32, #tpu.memory_space<vmem>>, vector<8x128xf32>,
    %c0_i32_10 = arith.constant 0 : i32
    %14 = arith.cmpi eq, %arg1, %c0_i32_10 : i32
    %15 = arith.extui %14 : i1 to i32
    %c0_i32_11 = arith.constant 0 : i32
    %16 = arith.cmpi ne, %15, %c0_i32_11 : i32
    scf.if %16 {
      %c0_12 = arith.constant 0 : index
      %c0_13 = arith.constant 0 : index
      %17 = vector.load %arg6[%c0_12, %c0_13] : memref<8x128xf32, #tpu.memory_space<vmem>>, vector<8x128xf32>
      %18 = vector.shape_cast %17 : vector<8x128xf32> to vector<1x8x128xf32>
      %c0_14 = arith.constant 0 : index
      %c0_15 = arith.constant 0 : index
      %c0_16 = arith.constant 0 : index
      %19 = vector.load %arg5[%c0_14, %c0_15, %c0_16] : memref<1x8x128xf32, #tpu.memory_space<vmem>>, vector<1x8x128xf32>
      tpu.vector_store %arg5[%c0_14, %c0_15, %c0_16], %18 {strides = array<i32>} : memref<1x8x128xf32, #tpu.memory_space<vmem>>, vector<1x8x128xf32>,
    } else {
    }
    return
  }
  func.func @transform_0(%arg0: i32, %arg1: i32) -> (i32, i32) {
    %c1_i32 = arith.constant 1 : i32
    %0 = arith.muli %arg0, %c1_i32 : i32
    %1 = arith.addi %0, %arg1 : i32
    %c0_i32 = arith.constant 0 : i32
    %c0_i32_0 = arith.constant 0 : i32
    return %1, %c0_i32 : i32, i32
  }
  func.func @transform_1(%arg0: i32, %arg1: i32) -> (i32, i32) {
    %c1_i32 = arith.constant 1 : i32
    %0 = arith.muli %arg0, %c1_i32 : i32
    %1 = arith.addi %0, %arg1 : i32
    %c0_i32 = arith.constant 0 : i32
    %c0_i32_0 = arith.constant 0 : i32
    return %1, %c0_i32 : i32, i32
  }
  func.func @transform_2(%arg0: i32, %arg1: i32) -> (i32, i32) {
    %c1_i32 = arith.constant 1 : i32
    %0 = arith.muli %arg0, %c1_i32 : i32
    %1 = arith.addi %0, %arg1 : i32
    %c0_i32 = arith.constant 0 : i32
    %c0_i32_0 = arith.constant 0 : i32
    return %1, %c0_i32 : i32, i32
  }
  func.func @transform_3(%arg0: i32, %arg1: i32) -> (i32, i32, i32) {
    %c0_i32 = arith.constant 0 : i32
    %c0_i32_0 = arith.constant 0 : i32
    %c0_i32_1 = arith.constant 0 : i32
    return %arg0, %c0_i32, %c0_i32_0 : i32, i32, i32
  }
}

</mosaic_0001>

<llo_original>
// kernel: tpu_custom_call.1
$region0: #{tpu_custom_call.1}
  #allocation0 [shape = 'u32[]', space=smem, size = 0x4, offset = 0x4, fixed_abs, tag = 'smem constant byte address 0x4 - core index']
  #allocation1 [shape = 'u32[144,128]{1,0:T(1,128)}', space=vmem, size = 0x12000, scoped, tag = 'internal scratch']
  #allocation2 [shape = 'f32[8,128]{1,0:T(8,128)}', space=vmem, size = 0x1000, scoped, tag = 'scratch operand']
  %s0 = inlined_call_operand.hbm [shape: f32[816,128], index: 0, kind: input, shape index: {}]
  %s1 = inlined_call_operand.hbm [shape: f32[816,128], index: 1, kind: input, shape index: {}]
  %s2 = inlined_call_operand.hbm [shape: f32[816,128], index: 2, kind: input, shape index: {}]
  %s3 = inlined_call_operand.hbm [shape: f32[1,8,128], index: 3, kind: output, shape index: {}]
  %s4 = sld [smem:[#allocation0]]
  $region42: #{tpu_custom_call.1} parent=0
    _
  %s6 = ssub.s32 1, %s4
  %s7 = scalar_select 0, %s6, %s4
  $region1: #{tpu_custom_call.1} parent=0
    #allocation3 [shape = 'u8[417792]{0}', space=vmem, size = 0x66000, scoped, tag = 'input window, operand 0, single buffered']
    #allocation4 [shape = 's32[1]{0}', space=sflag, size = 0x4, scoped, tag = 'scoped memory for tpu_custom_call.1']
    #allocation5 [shape = 's32[1]{0}', space=sflag, size = 0x4, scoped, tag = 'scoped memory for tpu_custom_call.1']
    #allocation6 [shape = 'u8[417792]{0}', space=vmem, size = 0x66000, scoped, tag = 'input window, operand 1, single buffered']
    #allocation7 [shape = 's32[1]{0}', space=sflag, size = 0x4, scoped, tag = 'scoped memory for tpu_custom_call.1']
    #allocation8 [shape = 'u8[417792]{0}', space=vmem, size = 0x66000, scoped, tag = 'input window, operand 2, single buffered']
    #allocation9 [shape = 'u8[4096]{0}', space=vmem, size = 0x1000, scoped, tag = 'output window, operand 0, single buffered']
    %8 = vsyncpa [#allocation4], 0
    %9 = vsyncpa [#allocation7], 0
    %10 = vsyncpa [#allocation5], 0
    // Predicated region
    $region2: #{tpu_custom_call.1} parent=1 // pred_check
      _
    $region3: #{tpu_custom_call.1} parent=1 // pred_check_branch
      %12 = sbr.rel (0) target = $region5
    $region4: #{tpu_custom_call.1} parent=1 // pred_region
      %s13 = sadd.s32 0, 0
      %s14 = smul.u32 102, %s13
      %s16 = ssub.s32 13056, 13056
      %17 = vsyncadd [#allocation4], %s16
      %s18 = smul.addr %s14, 128
      %s19 = scalar_lea.hbm %s0, %s18
      %s20 = sshll.u32 [#allocation3], 4
      %s21 = int_to_ptr.vmem [resolvable:$true] %s20
      %26 = dma.hbm_to_vmem [thread:$0]  %s19, 13056, %s21, [#allocation4], 128, 128, 8
    $region5: #{tpu_custom_call.1} parent=1 // pred_fallthru
      _
    // Predicated region
    $region6: #{tpu_custom_call.1} parent=1 // pred_check
      _
    $region7: #{tpu_custom_call.1} parent=1 // pred_check_branch
      %28 = sbr.rel (0) target = $region9
    $region8: #{tpu_custom_call.1} parent=1 // pred_region
      %s29 = sadd.s32 0, 0
      %s30 = smul.u32 102, %s29
      %s32 = ssub.s32 13056, 13056
      %33 = vsyncadd [#allocation7], %s32
      %s34 = smul.addr %s30, 128
      %s35 = scalar_lea.hbm %s1, %s34
      %s36 = sshll.u32 [#allocation6], 4
      %s37 = int_to_ptr.vmem [resolvable:$true] %s36
      %42 = dma.hbm_to_vmem [thread:$0]  %s35, 13056, %s37, [#allocation7], 128, 128, 8
    $region9: #{tpu_custom_call.1} parent=1 // pred_fallthru
      _
    // Predicated region
    $region10: #{tpu_custom_call.1} parent=1 // pred_check
      _
    $region11: #{tpu_custom_call.1} parent=1 // pred_check_branch
      %44 = sbr.rel (0) target = $region13
    $region12: #{tpu_custom_call.1} parent=1 // pred_region
      %s45 = sadd.s32 0, 0
      %s46 = smul.u32 102, %s45
      %s48 = ssub.s32 13056, 13056
      %49 = vsyncadd [#allocation7], %s48
      %s50 = smul.addr %s46, 128
      %s51 = scalar_lea.hbm %s2, %s50
      %s52 = sshll.u32 [#allocation8], 4
      %s53 = int_to_ptr.vmem [resolvable:$true] %s52
      %58 = dma.hbm_to_vmem [thread:$0]  %s51, 13056, %s53, [#allocation7], 128, 128, 8
    $region13: #{tpu_custom_call.1} parent=1 // pred_fallthru
      _
    // Predicated region
    $region14: #{tpu_custom_call.1} parent=1 // pred_check
      _
    $region15: #{tpu_custom_call.1} parent=1 // pred_check_branch
      %60 = sbr.rel (0) target = $region17
    $region16: #{tpu_custom_call.1} parent=1 // pred_region
      %61 = dma.done [#allocation4], 13056
    $region17: #{tpu_custom_call.1} parent=1 // pred_fallthru
      _
    // Predicated region
    $region18: #{tpu_custom_call.1} parent=1 // pred_check
      _
    $region19: #{tpu_custom_call.1} parent=1 // pred_check_branch
      %63 = sbr.rel (0) target = $region21
    $region20: #{tpu_custom_call.1} parent=1 // pred_region
      %64 = dma.done [#allocation7], 13056
    $region21: #{tpu_custom_call.1} parent=1 // pred_fallthru
      _
    // Predicated region
    $region22: #{tpu_custom_call.1} parent=1 // pred_check
      _
    $region23: #{tpu_custom_call.1} parent=1 // pred_check_branch
      %66 = sbr.rel (0) target = $region25
    $region24: #{tpu_custom_call.1} parent=1 // pred_region
      %67 = dma.done [#allocation7], 13056
    $region25: #{tpu_custom_call.1} parent=1 // pred_fallthru
      _
    %s68 = sadd.s32 0, 0
    %s69 = smul.u32 102, %s68
    %s70 = sadd.s32 0, 0
    %s71 = smul.u32 102, %s70
    %s72 = sadd.s32 0, 0
    %s73 = smul.u32 102, %s72
    %p74 = scmp.eq.s32.totalorder 0, 0
    // Predicated region
    $region26: #{tpu_custom_call.1} parent=1 // pred_check
      %p75 = pneg %p74
    $region27: #{tpu_custom_call.1} parent=1 // pred_check_branch
      %77 = sbr.rel (%p75) target = $region29
    $region28: #{tpu_custom_call.1} parent=1 // pred_region
      %78 = vst [vmem:[#allocation2] sm:$0xff] 0.0
    $region29: #{tpu_custom_call.1} parent=1 // pred_fallthru
      _
    %v79 = vld [vmem:[#allocation8] sm:$0xff]
    %v80 = vld [vmem:[#allocation8 + $0x8] sm:$0xff]
    %v81 = vld [vmem:[#allocation8 + $0x10] sm:$0xff]
    %v82 = vld [vmem:[#allocation8 + $0x18] sm:$0xff]
    %v83 = vld [vmem:[#allocation8 + $0x20] sm:$0xff]
    %v84 = vld [vmem:[#allocation8 + $0x28] sm:$0xff]
    %v85 = vld [vmem:[#allocation8 + $0x30] sm:$0xff]
    %v86 = vld [vmem:[#allocation8 + $0x38] sm:$0xff]
    %v87 = vld [vmem:[#allocation8 + $0x40] sm:$0xff]
    %v88 = vld [vmem:[#allocation8 + $0x48] sm:$0xff]
    %v89 = vld [vmem:[#allocation8 + $0x50] sm:$0xff]
    %v90 = vld [vmem:[#allocation8 + $0x58] sm:$0xff]
    %v91 = vld [vmem:[#allocation8 + $0x60] sm:$0xff]
    %v92 = vld [vmem:[#allocation8 + $0x68] sm:$0xff]
    %v93 = vld [vmem:[#allocation8 + $0x70] sm:$0xff]
    %v94 = vld [vmem:[#allocation8 + $0x78] sm:$0xff]
    %v95 = vld [vmem:[#allocation8 + $0x80] sm:$0xff]
    %v96 = vld [vmem:[#allocation8 + $0x88] sm:$0xff]
    %v97 = vld [vmem:[#allocation8 + $0x90] sm:$0xff]
    %v98 = vld [vmem:[#allocation8 + $0x98] sm:$0xff]
    %v99 = vld [vmem:[#allocation8 + $0xa0] sm:$0xff]
    %v100 = vld [vmem:[#allocation8 + $0xa8] sm:$0xff]
    %v101 = vld [vmem:[#allocation8 + $0xb0] sm:$0xff]
    %v102 = vld [vmem:[#allocation8 + $0xb8] sm:$0xff]
    %v103 = vld [vmem:[#allocation8 + $0xc0] sm:$0xff]
    %v104 = vld [vmem:[#allocation8 + $0xc8] sm:$0xff]
    %v105 = vld [vmem:[#allocation8 + $0xd0] sm:$0xff]
    %v106 = vld [vmem:[#allocation8 + $0xd8] sm:$0xff]
    %v107 = vld [vmem:[#allocation8 + $0xe0] sm:$0xff]
    %v108 = vld [vmem:[#allocation8 + $0xe8] sm:$0xff]
    %v109 = vld [vmem:[#allocation8 + $0xf0] sm:$0xff]
    %v110 = vld [vmem:[#allocation8 + $0xf8] sm:$0xff]
    %v111 = vld [vmem:[#allocation8 + $0x100] sm:$0xff]
    %v112 = vld [vmem:[#allocation8 + $0x108] sm:$0xff]
    %v113 = vld [vmem:[#allocation8 + $0x110] sm:$0xff]
    %v114 = vld [vmem:[#allocation8 + $0x118] sm:$0xff]
    %v115 = vld [vmem:[#allocation8 + $0x120] sm:$0xff]
    %v116 = vld [vmem:[#allocation8 + $0x128] sm:$0xff]
    %v117 = vld [vmem:[#allocation8 + $0x130] sm:$0xff]
    %v118 = vld [vmem:[#allocation8 + $0x138] sm:$0xff]
    %v119 = vld [vmem:[#allocation8 + $0x140] sm:$0xff]
    %v120 = vld [vmem:[#allocation8 + $0x148] sm:$0xff]
    %v121 = vld [vmem:[#allocation8 + $0x150] sm:$0xff]
    %v122 = vld [vmem:[#allocation8 + $0x158] sm:$0xff]
    %v123 = vld [vmem:[#allocation8 + $0x160] sm:$0xff]
    %v124 = vld [vmem:[#allocation8 + $0x168] sm:$0xff]
    %v125 = vld [vmem:[#allocation8 + $0x170] sm:$0xff]
    %v126 = vld [vmem:[#allocation8 + $0x178] sm:$0xff]
    %v127 = vld [vmem:[#allocation8 + $0x180] sm:$0xff]
    %v128 = vld [vmem:[#allocation8 + $0x188] sm:$0xff]
    %v129 = vld [vmem:[#allocation8 + $0x190] sm:$0xff]
    %v130 = vld [vmem:[#allocation8 + $0x198] sm:$0xff]
    %v131 = vld [vmem:[#allocation8 + $0x1a0] sm:$0xff]
    %v132 = vld [vmem:[#allocation8 + $0x1a8] sm:$0xff]
    %v133 = vld [vmem:[#allocation8 + $0x1b0] sm:$0xff]
    %v134 = vld [vmem:[#allocation8 + $0x1b8] sm:$0xff]
    %v135 = vld [vmem:[#allocation8 + $0x1c0] sm:$0xff]
    %v136 = vld [vmem:[#allocation8 + $0x1c8] sm:$0xff]
    %v137 = vld [vmem:[#allocation8 + $0x1d0] sm:$0xff]
    %v138 = vld [vmem:[#allocation8 + $0x1d8] sm:$0xff]
    %v139 = vld [vmem:[#allocation8 + $0x1e0] sm:$0xff]
    %v140 = vld [vmem:[#allocation8 + $0x1e8] sm:$0xff]
    %v141 = vld [vmem:[#allocation8 + $0x1f0] sm:$0xff]
    %v142 = vld [vmem:[#allocation8 + $0x1f8] sm:$0xff]
    %v143 = vld [vmem:[#allocation8 + $0x200] sm:$0xff]
    %v144 = vld [vmem:[#allocation8 + $0x208] sm:$0xff]
    %v145 = vld [vmem:[#allocation8 + $0x210] sm:$0xff]
    %v146 = vld [vmem:[#allocation8 + $0x218] sm:$0xff]
    %v147 = vld [vmem:[#allocation8 + $0x220] sm:$0xff]
    %v148 = vld [vmem:[#allocation8 + $0x228] sm:$0xff]
    %v149 = vld [vmem:[#allocation8 + $0x230] sm:$0xff]
    %v150 = vld [vmem:[#allocation8 + $0x238] sm:$0xff]
    %v151 = vld [vmem:[#allocation8 + $0x240] sm:$0xff]
    %v152 = vld [vmem:[#allocation8 + $0x248] sm:$0xff]
    %v153 = vld [vmem:[#allocation8 + $0x250] sm:$0xff]
    %v154 = vld [vmem:[#allocation8 + $0x258] sm:$0xff]
    %v155 = vld [vmem:[#allocation8 + $0x260] sm:$0xff]
    %v156 = vld [vmem:[#allocation8 + $0x268] sm:$0xff]
    %v157 = vld [vmem:[#allocation8 + $0x270] sm:$0xff]
    %v158 = vld [vmem:[#allocation8 + $0x278] sm:$0xff]
    %v159 = vld [vmem:[#allocation8 + $0x280] sm:$0xff]
    %v160 = vld [vmem:[#allocation8 + $0x288] sm:$0xff]
    %v161 = vld [vmem:[#allocation8 + $0x290] sm:$0xff]
    %v162 = vld [vmem:[#allocation8 + $0x298] sm:$0xff]
    %v163 = vld [vmem:[#allocation8 + $0x2a0] sm:$0xff]
    %v164 = vld [vmem:[#allocation8 + $0x2a8] sm:$0xff]
    %v165 = vld [vmem:[#allocation8 + $0x2b0] sm:$0xff]
    %v166 = vld [vmem:[#allocation8 + $0x2b8] sm:$0xff]
    %v167 = vld [vmem:[#allocation8 + $0x2c0] sm:$0xff]
    %v168 = vld [vmem:[#allocation8 + $0x2c8] sm:$0xff]
    %v169 = vld [vmem:[#allocation8 + $0x2d0] sm:$0xff]
    %v170 = vld [vmem:[#allocation8 + $0x2d8] sm:$0xff]
    %v171 = vld [vmem:[#allocation8 + $0x2e0] sm:$0xff]
    %v172 = vld [vmem:[#allocation8 + $0x2e8] sm:$0xff]
    %v173 = vld [vmem:[#allocation8 + $0x2f0] sm:$0xff]
    %v174 = vld [vmem:[#allocation8 + $0x2f8] sm:$0xff]
    %v175 = vld [vmem:[#allocation8 + $0x300] sm:$0xff]
    %v176 = vld [vmem:[#allocation8 + $0x308] sm:$0xff]
    %v177 = vld [vmem:[#allocation8 + $0x310] sm:$0xff]
    %v178 = vld [vmem:[#allocation8 + $0x318] sm:$0xff]
    %v179 = vld [vmem:[#allocation8 + $0x320] sm:$0xff]
    %v180 = vld [vmem:[#allocation8 + $0x328] sm:$0xff]
    %v181 = vld [vmem:[#allocation3] sm:$0xff]
    %v182 = vld [vmem:[#allocation3 + $0x8] sm:$0xff]
    %v183 = vld [vmem:[#allocation3 + $0x10] sm:$0xff]
    %v184 = vld [vmem:[#allocation3 + $0x18] sm:$0xff]
    %v185 = vld [vmem:[#allocation3 + $0x20] sm:$0xff]
    %v186 = vld [vmem:[#allocation3 + $0x28] sm:$0xff]
    %v187 = vld [vmem:[#allocation3 + $0x30] sm:$0xff]
    %v188 = vld [vmem:[#allocation3 + $0x38] sm:$0xff]
    %v189 = vld [vmem:[#allocation3 + $0x40] sm:$0xff]
    %v190 = vld [vmem:[#allocation3 + $0x48] sm:$0xff]
    %v191 = vld [vmem:[#allocation3 + $0x50] sm:$0xff]
    %v192 = vld [vmem:[#allocation3 + $0x58] sm:$0xff]
    %v193 = vld [vmem:[#allocation3 + $0x60] sm:$0xff]
    %v194 = vld [vmem:[#allocation3 + $0x68] sm:$0xff]
    %v195 = vld [vmem:[#allocation3 + $0x70] sm:$0xff]
    %v196 = vld [vmem:[#allocation3 + $0x78] sm:$0xff]
    %v197 = vld [vmem:[#allocation3 + $0x80] sm:$0xff]
    %v198 = vld [vmem:[#allocation3 + $0x88] sm:$0xff]
    %v199 = vld [vmem:[#allocation3 + $0x90] sm:$0xff]
    %v200 = vld [vmem:[#allocation3 + $0x98] sm:$0xff]
    %v201 = vld [vmem:[#allocation3 + $0xa0] sm:$0xff]
    %v202 = vld [vmem:[#allocation3 + $0xa8] sm:$0xff]
    %v203 = vld [vmem:[#allocation3 + $0xb0] sm:$0xff]
    %v204 = vld [vmem:[#allocation3 + $0xb8] sm:$0xff]
    %v205 = vld [vmem:[#allocation3 + $0xc0] sm:$0xff]
    %v206 = vld [vmem:[#allocation3 + $0xc8] sm:$0xff]
    %v207 = vld [vmem:[#allocation3 + $0xd0] sm:$0xff]
    %v208 = vld [vmem:[#allocation3 + $0xd8] sm:$0xff]
    %v209 = vld [vmem:[#allocation3 + $0xe0] sm:$0xff]
    %v210 = vld [vmem:[#allocation3 + $0xe8] sm:$0xff]
    %v211 = vld [vmem:[#allocation3 + $0xf0] sm:$0xff]
    %v212 = vld [vmem:[#allocation3 + $0xf8] sm:$0xff]
    %v213 = vld [vmem:[#allocation3 + $0x100] sm:$0xff]
    %v214 = vld [vmem:[#allocation3 + $0x108] sm:$0xff]
    %v215 = vld [vmem:[#allocation3 + $0x110] sm:$0xff]
    %v216 = vld [vmem:[#allocation3 + $0x118] sm:$0xff]
    %v217 = vld [vmem:[#allocation3 + $0x120] sm:$0xff]
    %v218 = vld [vmem:[#allocation3 + $0x128] sm:$0xff]
    %v219 = vld [vmem:[#allocation3 + $0x130] sm:$0xff]
    %v220 = vld [vmem:[#allocation3 + $0x138] sm:$0xff]
    %v221 = vld [vmem:[#allocation3 + $0x140] sm:$0xff]
    %v222 = vld [vmem:[#allocation3 + $0x148] sm:$0xff]
    %v223 = vld [vmem:[#allocation3 + $0x150] sm:$0xff]
    %v224 = vld [vmem:[#allocation3 + $0x158] sm:$0xff]
    %v225 = vld [vmem:[#allocation3 + $0x160] sm:$0xff]
    %v226 = vld [vmem:[#allocation3 + $0x168] sm:$0xff]
    %v227 = vld [vmem:[#allocation3 + $0x170] sm:$0xff]
    %v228 = vld [vmem:[#allocation3 + $0x178] sm:$0xff]
    %v229 = vld [vmem:[#allocation3 + $0x180] sm:$0xff]
    %v230 = vld [vmem:[#allocation3 + $0x188] sm:$0xff]
    %v231 = vld [vmem:[#allocation3 + $0x190] sm:$0xff]
    %v232 = vld [vmem:[#allocation3 + $0x198] sm:$0xff]
    %v233 = vld [vmem:[#allocation3 + $0x1a0] sm:$0xff]
    %v234 = vld [vmem:[#allocation3 + $0x1a8] sm:$0xff]
    %v235 = vld [vmem:[#allocation3 + $0x1b0] sm:$0xff]
    %v236 = vld [vmem:[#allocation3 + $0x1b8] sm:$0xff]
    %v237 = vld [vmem:[#allocation3 + $0x1c0] sm:$0xff]
    %v238 = vld [vmem:[#allocation3 + $0x1c8] sm:$0xff]
    %v239 = vld [vmem:[#allocation3 + $0x1d0] sm:$0xff]
    %v240 = vld [vmem:[#allocation3 + $0x1d8] sm:$0xff]
    %v241 = vld [vmem:[#allocation3 + $0x1e0] sm:$0xff]
    %v242 = vld [vmem:[#allocation3 + $0x1e8] sm:$0xff]
    %v243 = vld [vmem:[#allocation3 + $0x1f0] sm:$0xff]
    %v244 = vld [vmem:[#allocation3 + $0x1f8] sm:$0xff]
    %v245 = vld [vmem:[#allocation3 + $0x200] sm:$0xff]
    %v246 = vld [vmem:[#allocation3 + $0x208] sm:$0xff]
    %v247 = vld [vmem:[#allocation3 + $0x210] sm:$0xff]
    %v248 = vld [vmem:[#allocation3 + $0x218] sm:$0xff]
    %v249 = vld [vmem:[#allocation3 + $0x220] sm:$0xff]
    %v250 = vld [vmem:[#allocation3 + $0x228] sm:$0xff]
    %v251 = vld [vmem:[#allocation3 + $0x230] sm:$0xff]
    %v252 = vld [vmem:[#allocation3 + $0x238] sm:$0xff]
    %v253 = vld [vmem:[#allocation3 + $0x240] sm:$0xff]
    %v254 = vld [vmem:[#allocation3 + $0x248] sm:$0xff]
    %v255 = vld [vmem:[#allocation3 + $0x250] sm:$0xff]
    %v256 = vld [vmem:[#allocation3 + $0x258] sm:$0xff]
    %v257 = vld [vmem:[#allocation3 + $0x260] sm:$0xff]
    %v258 = vld [vmem:[#allocation3 + $0x268] sm:$0xff]
    %v259 = vld [vmem:[#allocation3 + $0x270] sm:$0xff]
    %v260 = vld [vmem:[#allocation3 + $0x278] sm:$0xff]
    %v261 = vld [vmem:[#allocation3 + $0x280] sm:$0xff]
    %v262 = vld [vmem:[#allocation3 + $0x288] sm:$0xff]
    %v263 = vld [vmem:[#allocation3 + $0x290] sm:$0xff]
    %v264 = vld [vmem:[#allocation3 + $0x298] sm:$0xff]
    %v265 = vld [vmem:[#allocation3 + $0x2a0] sm:$0xff]
    %v266 = vld [vmem:[#allocation3 + $0x2a8] sm:$0xff]
    %v267 = vld [vmem:[#allocation3 + $0x2b0] sm:$0xff]
    %v268 = vld [vmem:[#allocation3 + $0x2b8] sm:$0xff]
    %v269 = vld [vmem:[#allocation3 + $0x2c0] sm:$0xff]
    %v270 = vld [vmem:[#allocation3 + $0x2c8] sm:$0xff]
    %v271 = vld [vmem:[#allocation3 + $0x2d0] sm:$0xff]
    %v272 = vld [vmem:[#allocation3 + $0x2d8] sm:$0xff]
    %v273 = vld [vmem:[#allocation3 + $0x2e0] sm:$0xff]
    %v274 = vld [vmem:[#allocation3 + $0x2e8] sm:$0xff]
    %v275 = vld [vmem:[#allocation3 + $0x2f0] sm:$0xff]
    %v276 = vld [vmem:[#allocation3 + $0x2f8] sm:$0xff]
    %v277 = vld [vmem:[#allocation3 + $0x300] sm:$0xff]
    %v278 = vld [vmem:[#allocation3 + $0x308] sm:$0xff]
    %v279 = vld [vmem:[#allocation3 + $0x310] sm:$0xff]
    %v280 = vld [vmem:[#allocation3 + $0x318] sm:$0xff]
    %v281 = vld [vmem:[#allocation3 + $0x320] sm:$0xff]
    %v282 = vld [vmem:[#allocation3 + $0x328] sm:$0xff]
    %v283 = vld [vmem:[#allocation6] sm:$0xff]
    %v284 = vld [vmem:[#allocation6 + $0x8] sm:$0xff]
    %v285 = vld [vmem:[#allocation6 + $0x10] sm:$0xff]
    %v286 = vld [vmem:[#allocation6 + $0x18] sm:$0xff]
    %v287 = vld [vmem:[#allocation6 + $0x20] sm:$0xff]
    %v288 = vld [vmem:[#allocation6 + $0x28] sm:$0xff]
    %v289 = vld [vmem:[#allocation6 + $0x30] sm:$0xff]
    %v290 = vld [vmem:[#allocation6 + $0x38] sm:$0xff]
    %v291 = vld [vmem:[#allocation6 + $0x40] sm:$0xff]
    %v292 = vld [vmem:[#allocation6 + $0x48] sm:$0xff]
    %v293 = vld [vmem:[#allocation6 + $0x50] sm:$0xff]
    %v294 = vld [vmem:[#allocation6 + $0x58] sm:$0xff]
    %v295 = vld [vmem:[#allocation6 + $0x60] sm:$0xff]
    %v296 = vld [vmem:[#allocation6 + $0x68] sm:$0xff]
    %v297 = vld [vmem:[#allocation6 + $0x70] sm:$0xff]
    %v298 = vld [vmem:[#allocation6 + $0x78] sm:$0xff]
    %v299 = vld [vmem:[#allocation6 + $0x80] sm:$0xff]
    %v300 = vld [vmem:[#allocation6 + $0x88] sm:$0xff]
    %v301 = vld [vmem:[#allocation6 + $0x90] sm:$0xff]
    %v302 = vld [vmem:[#allocation6 + $0x98] sm:$0xff]
    %v303 = vld [vmem:[#allocation6 + $0xa0] sm:$0xff]
    %v304 = vld [vmem:[#allocation6 + $0xa8] sm:$0xff]
    %v305 = vld [vmem:[#allocation6 + $0xb0] sm:$0xff]
    %v306 = vld [vmem:[#allocation6 + $0xb8] sm:$0xff]
    %v307 = vld [vmem:[#allocation6 + $0xc0] sm:$0xff]
    %v308 = vld [vmem:[#allocation6 + $0xc8] sm:$0xff]
    %v309 = vld [vmem:[#allocation6 + $0xd0] sm:$0xff]
    %v310 = vld [vmem:[#allocation6 + $0xd8] sm:$0xff]
    %v311 = vld [vmem:[#allocation6 + $0xe0] sm:$0xff]
    %v312 = vld [vmem:[#allocation6 + $0xe8] sm:$0xff]
    %v313 = vld [vmem:[#allocation6 + $0xf0] sm:$0xff]
    %v314 = vld [vmem:[#allocation6 + $0xf8] sm:$0xff]
    %v315 = vld [vmem:[#allocation6 + $0x100] sm:$0xff]
    %v316 = vld [vmem:[#allocation6 + $0x108] sm:$0xff]
    %v317 = vld [vmem:[#allocation6 + $0x110] sm:$0xff]
    %v318 = vld [vmem:[#allocation6 + $0x118] sm:$0xff]
    %v319 = vld [vmem:[#allocation6 + $0x120] sm:$0xff]
    %v320 = vld [vmem:[#allocation6 + $0x128] sm:$0xff]
    %v321 = vld [vmem:[#allocation6 + $0x130] sm:$0xff]
    %v322 = vld [vmem:[#allocation6 + $0x138] sm:$0xff]
    %v323 = vld [vmem:[#allocation6 + $0x140] sm:$0xff]
    %v324 = vld [vmem:[#allocation6 + $0x148] sm:$0xff]
    %v325 = vld [vmem:[#allocation6 + $0x150] sm:$0xff]
    %v326 = vld [vmem:[#allocation6 + $0x158] sm:$0xff]
    %v327 = vld [vmem:[#allocation6 + $0x160] sm:$0xff]
    %v328 = vld [vmem:[#allocation6 + $0x168] sm:$0xff]
    %v329 = vld [vmem:[#allocation6 + $0x170] sm:$0xff]
    %v330 = vld [vmem:[#allocation6 + $0x178] sm:$0xff]
    %v331 = vld [vmem:[#allocation6 + $0x180] sm:$0xff]
    %v332 = vld [vmem:[#allocation6 + $0x188] sm:$0xff]
    %v333 = vld [vmem:[#allocation6 + $0x190] sm:$0xff]
    %v334 = vld [vmem:[#allocation6 + $0x198] sm:$0xff]
    %v335 = vld [vmem:[#allocation6 + $0x1a0] sm:$0xff]
    %v336 = vld [vmem:[#allocation6 + $0x1a8] sm:$0xff]
    %v337 = vld [vmem:[#allocation6 + $0x1b0] sm:$0xff]
    %v338 = vld [vmem:[#allocation6 + $0x1b8] sm:$0xff]
    %v339 = vld [vmem:[#allocation6 + $0x1c0] sm:$0xff]
    %v340 = vld [vmem:[#allocation6 + $0x1c8] sm:$0xff]
    %v341 = vld [vmem:[#allocation6 + $0x1d0] sm:$0xff]
    %v342 = vld [vmem:[#allocation6 + $0x1d8] sm:$0xff]
    %v343 = vld [vmem:[#allocation6 + $0x1e0] sm:$0xff]
    %v344 = vld [vmem:[#allocation6 + $0x1e8] sm:$0xff]
    %v345 = vld [vmem:[#allocation6 + $0x1f0] sm:$0xff]
    %v346 = vld [vmem:[#allocation6 + $0x1f8] sm:$0xff]
    %v347 = vld [vmem:[#allocation6 + $0x200] sm:$0xff]
    %v348 = vld [vmem:[#allocation6 + $0x208] sm:$0xff]
    %v349 = vld [vmem:[#allocation6 + $0x210] sm:$0xff]
    %v350 = vld [vmem:[#allocation6 + $0x218] sm:$0xff]
    %v351 = vld [vmem:[#allocation6 + $0x220] sm:$0xff]
    %v352 = vld [vmem:[#allocation6 + $0x228] sm:$0xff]
    %v353 = vld [vmem:[#allocation6 + $0x230] sm:$0xff]
    %v354 = vld [vmem:[#allocation6 + $0x238] sm:$0xff]
    %v355 = vld [vmem:[#allocation6 + $0x240] sm:$0xff]
    %v356 = vld [vmem:[#allocation6 + $0x248] sm:$0xff]
    %v357 = vld [vmem:[#allocation6 + $0x250] sm:$0xff]
    %v358 = vld [vmem:[#allocation6 + $0x258] sm:$0xff]
    %v359 = vld [vmem:[#allocation6 + $0x260] sm:$0xff]
    %v360 = vld [vmem:[#allocation6 + $0x268] sm:$0xff]
    %v361 = vld [vmem:[#allocation6 + $0x270] sm:$0xff]
    %v362 = vld [vmem:[#allocation6 + $0x278] sm:$0xff]
    %v363 = vld [vmem:[#allocation6 + $0x280] sm:$0xff]
    %v364 = vld [vmem:[#allocation6 + $0x288] sm:$0xff]
    %v365 = vld [vmem:[#allocation6 + $0x290] sm:$0xff]
    %v366 = vld [vmem:[#allocation6 + $0x298] sm:$0xff]
    %v367 = vld [vmem:[#allocation6 + $0x2a0] sm:$0xff]
    %v368 = vld [vmem:[#allocation6 + $0x2a8] sm:$0xff]
    %v369 = vld [vmem:[#allocation6 + $0x2b0] sm:$0xff]
    %v370 = vld [vmem:[#allocation6 + $0x2b8] sm:$0xff]
    %v371 = vld [vmem:[#allocation6 + $0x2c0] sm:$0xff]
    %v372 = vld [vmem:[#allocation6 + $0x2c8] sm:$0xff]
    %v373 = vld [vmem:[#allocation6 + $0x2d0] sm:$0xff]
    %v374 = vld [vmem:[#allocation6 + $0x2d8] sm:$0xff]
    %v375 = vld [vmem:[#allocation6 + $0x2e0] sm:$0xff]
    %v376 = vld [vmem:[#allocation6 + $0x2e8] sm:$0xff]
    %v377 = vld [vmem:[#allocation6 + $0x2f0] sm:$0xff]
    %v378 = vld [vmem:[#allocation6 + $0x2f8] sm:$0xff]
    %v379 = vld [vmem:[#allocation6 + $0x300] sm:$0xff]
    %v380 = vld [vmem:[#allocation6 + $0x308] sm:$0xff]
    %v381 = vld [vmem:[#allocation6 + $0x310] sm:$0xff]
    %v382 = vld [vmem:[#allocation6 + $0x318] sm:$0xff]
    %v383 = vld [vmem:[#allocation6 + $0x320] sm:$0xff]
    %v384 = vld [vmem:[#allocation6 + $0x328] sm:$0xff]
    %v385 = vsub.f32 %v181, %v283
    %v386 = vsub.f32 %v182, %v284
    %v387 = vsub.f32 %v183, %v285
    %v388 = vsub.f32 %v184, %v286
    %v389 = vsub.f32 %v185, %v287
    %v390 = vsub.f32 %v186, %v288
    %v391 = vsub.f32 %v187, %v289
    %v392 = vsub.f32 %v188, %v290
    %v393 = vsub.f32 %v189, %v291
    %v394 = vsub.f32 %v190, %v292
    %v395 = vsub.f32 %v191, %v293
    %v396 = vsub.f32 %v192, %v294
    %v397 = vsub.f32 %v193, %v295
    %v398 = vsub.f32 %v194, %v296
    %v399 = vsub.f32 %v195, %v297
    %v400 = vsub.f32 %v196, %v298
    %v401 = vsub.f32 %v197, %v299
    %v402 = vsub.f32 %v198, %v300
    %v403 = vsub.f32 %v199, %v301
    %v404 = vsub.f32 %v200, %v302
    %v405 = vsub.f32 %v201, %v303
    %v406 = vsub.f32 %v202, %v304
    %v407 = vsub.f32 %v203, %v305
    %v408 = vsub.f32 %v204, %v306
    %v409 = vsub.f32 %v205, %v307
    %v410 = vsub.f32 %v206, %v308
    %v411 = vsub.f32 %v207, %v309
    %v412 = vsub.f32 %v208, %v310
    %v413 = vsub.f32 %v209, %v311
    %v414 = vsub.f32 %v210, %v312
    %v415 = vsub.f32 %v211, %v313
    %v416 = vsub.f32 %v212, %v314
    %v417 = vsub.f32 %v213, %v315
    %v418 = vsub.f32 %v214, %v316
    %v419 = vsub.f32 %v215, %v317
    %v420 = vsub.f32 %v216, %v318
    %v421 = vsub.f32 %v217, %v319
    %v422 = vsub.f32 %v218, %v320
    %v423 = vsub.f32 %v219, %v321
    %v424 = vsub.f32 %v220, %v322
    %v425 = vsub.f32 %v221, %v323
    %v426 = vsub.f32 %v222, %v324
    %v427 = vsub.f32 %v223, %v325
    %v428 = vsub.f32 %v224, %v326
    %v429 = vsub.f32 %v225, %v327
    %v430 = vsub.f32 %v226, %v328
    %v431 = vsub.f32 %v227, %v329
    %v432 = vsub.f32 %v228, %v330
    %v433 = vsub.f32 %v229, %v331
    %v434 = vsub.f32 %v230, %v332
    %v435 = vsub.f32 %v231, %v333
    %v436 = vsub.f32 %v232, %v334
    %v437 = vsub.f32 %v233, %v335
    %v438 = vsub.f32 %v234, %v336
    %v439 = vsub.f32 %v235, %v337
    %v440 = vsub.f32 %v236, %v338
    %v441 = vsub.f32 %v237, %v339
    %v442 = vsub.f32 %v238, %v340
    %v443 = vsub.f32 %v239, %v341
    %v444 = vsub.f32 %v240, %v342
    %v445 = vsub.f32 %v241, %v343
    %v446 = vsub.f32 %v242, %v344
    %v447 = vsub.f32 %v243, %v345
    %v448 = vsub.f32 %v244, %v346
    %v449 = vsub.f32 %v245, %v347
    %v450 = vsub.f32 %v246, %v348
    %v451 = vsub.f32 %v247, %v349
    %v452 = vsub.f32 %v248, %v350
    %v453 = vsub.f32 %v249, %v351
    %v454 = vsub.f32 %v250, %v352
    %v455 = vsub.f32 %v251, %v353
    %v456 = vsub.f32 %v252, %v354
    %v457 = vsub.f32 %v253, %v355
    %v458 = vsub.f32 %v254, %v356
    %v459 = vsub.f32 %v255, %v357
    %v460 = vsub.f32 %v256, %v358
    %v461 = vsub.f32 %v257, %v359
    %v462 = vsub.f32 %v258, %v360
    %v463 = vsub.f32 %v259, %v361
    %v464 = vsub.f32 %v260, %v362
    %v465 = vsub.f32 %v261, %v363
    %v466 = vsub.f32 %v262, %v364
    %v467 = vsub.f32 %v263, %v365
    %v468 = vsub.f32 %v264, %v366
    %v469 = vsub.f32 %v265, %v367
    %v470 = vsub.f32 %v266, %v368
    %v471 = vsub.f32 %v267, %v369
    %v472 = vsub.f32 %v268, %v370
    %v473 = vsub.f32 %v269, %v371
    %v474 = vsub.f32 %v270, %v372
    %v475 = vsub.f32 %v271, %v373
    %v476 = vsub.f32 %v272, %v374
    %v477 = vsub.f32 %v273, %v375
    %v478 = vsub.f32 %v274, %v376
    %v479 = vsub.f32 %v275, %v377
    %v480 = vsub.f32 %v276, %v378
    %v481 = vsub.f32 %v277, %v379
    %v482 = vsub.f32 %v278, %v380
    %v483 = vsub.f32 %v279, %v381
    %v484 = vsub.f32 %v280, %v382
    %v485 = vsub.f32 %v281, %v383
    %v486 = vsub.f32 %v282, %v384
    %v487 = vmul.f32 %v385, %v79
    %v488 = vmul.f32 %v386, %v80
    %v489 = vmul.f32 %v387, %v81
    %v490 = vmul.f32 %v388, %v82
    %v491 = vmul.f32 %v389, %v83
    %v492 = vmul.f32 %v390, %v84
    %v493 = vmul.f32 %v391, %v85
    %v494 = vmul.f32 %v392, %v86
    %v495 = vmul.f32 %v393, %v87
    %v496 = vmul.f32 %v394, %v88
    %v497 = vmul.f32 %v395, %v89
    %v498 = vmul.f32 %v396, %v90
    %v499 = vmul.f32 %v397, %v91
    %v500 = vmul.f32 %v398, %v92
    %v501 = vmul.f32 %v399, %v93
    %v502 = vmul.f32 %v400, %v94
    %v503 = vmul.f32 %v401, %v95
    %v504 = vmul.f32 %v402, %v96
    %v505 = vmul.f32 %v403, %v97
    %v506 = vmul.f32 %v404, %v98
    %v507 = vmul.f32 %v405, %v99
    %v508 = vmul.f32 %v406, %v100
    %v509 = vmul.f32 %v407, %v101
    %v510 = vmul.f32 %v408, %v102
    %v511 = vmul.f32 %v409, %v103
    %v512 = vmul.f32 %v410, %v104
    %v513 = vmul.f32 %v411, %v105
    %v514 = vmul.f32 %v412, %v106
    %v515 = vmul.f32 %v413, %v107
    %v516 = vmul.f32 %v414, %v108
    %v517 = vmul.f32 %v415, %v109
    %v518 = vmul.f32 %v416, %v110
    %v519 = vmul.f32 %v417, %v111
    %v520 = vmul.f32 %v418, %v112
    %v521 = vmul.f32 %v419, %v113
    %v522 = vmul.f32 %v420, %v114
    %v523 = vmul.f32 %v421, %v115
    %v524 = vmul.f32 %v422, %v116
    %v525 = vmul.f32 %v423, %v117
    %v526 = vmul.f32 %v424, %v118
    %v527 = vmul.f32 %v425, %v119
    %v528 = vmul.f32 %v426, %v120
    %v529 = vmul.f32 %v427, %v121
    %v530 = vmul.f32 %v428, %v122
    %v531 = vmul.f32 %v429, %v123
    %v532 = vmul.f32 %v430, %v124
    %v533 = vmul.f32 %v431, %v125
    %v534 = vmul.f32 %v432, %v126
    %v535 = vmul.f32 %v433, %v127
    %v536 = vmul.f32 %v434, %v128
    %v537 = vmul.f32 %v435, %v129
    %v538 = vmul.f32 %v436, %v130
    %v539 = vmul.f32 %v437, %v131
    %v540 = vmul.f32 %v438, %v132
    %v541 = vmul.f32 %v439, %v133
    %v542 = vmul.f32 %v440, %v134
    %v543 = vmul.f32 %v441, %v135
    %v544 = vmul.f32 %v442, %v136
    %v545 = vmul.f32 %v443, %v137
    %v546 = vmul.f32 %v444, %v138
    %v547 = vmul.f32 %v445, %v139
    %v548 = vmul.f32 %v446, %v140
    %v549 = vmul.f32 %v447, %v141
    %v550 = vmul.f32 %v448, %v142
    %v551 = vmul.f32 %v449, %v143
    %v552 = vmul.f32 %v450, %v144
    %v553 = vmul.f32 %v451, %v145
    %v554 = vmul.f32 %v452, %v146
    %v555 = vmul.f32 %v453, %v147
    %v556 = vmul.f32 %v454, %v148
    %v557 = vmul.f32 %v455, %v149
    %v558 = vmul.f32 %v456, %v150
    %v559 = vmul.f32 %v457, %v151
    %v560 = vmul.f32 %v458, %v152
    %v561 = vmul.f32 %v459, %v153
    %v562 = vmul.f32 %v460, %v154
    %v563 = vmul.f32 %v461, %v155
    %v564 = vmul.f32 %v462, %v156
    %v565 = vmul.f32 %v463, %v157
    %v566 = vmul.f32 %v464, %v158
    %v567 = vmul.f32 %v465, %v159
    %v568 = vmul.f32 %v466, %v160
    %v569 = vmul.f32 %v467, %v161
    %v570 = vmul.f32 %v468, %v162
    %v571 = vmul.f32 %v469, %v163
    %v572 = vmul.f32 %v470, %v164
    %v573 = vmul.f32 %v471, %v165
    %v574 = vmul.f32 %v472, %v166
    %v575 = vmul.f32 %v473, %v167
    %v576 = vmul.f32 %v474, %v168
    %v577 = vmul.f32 %v475, %v169
    %v578 = vmul.f32 %v476, %v170
    %v579 = vmul.f32 %v477, %v171
    %v580 = vmul.f32 %v478, %v172
    %v581 = vmul.f32 %v479, %v173
    %v582 = vmul.f32 %v480, %v174
    %v583 = vmul.f32 %v481, %v175
    %v584 = vmul.f32 %v482, %v176
    %v585 = vmul.f32 %v483, %v177
    %v586 = vmul.f32 %v484, %v178
    %v587 = vmul.f32 %v485, %v179
    %v588 = vmul.f32 %v486, %v180
    %v589 = vmul.f32 %v487, %v487
    %v590 = vmul.f32 %v488, %v488
    %v591 = vmul.f32 %v489, %v489
    %v592 = vmul.f32 %v490, %v490
    %v593 = vmul.f32 %v491, %v491
    %v594 = vmul.f32 %v492, %v492
    %v595 = vmul.f32 %v493, %v493
    %v596 = vmul.f32 %v494, %v494
    %v597 = vmul.f32 %v495, %v495
    %v598 = vmul.f32 %v496, %v496
    %v599 = vmul.f32 %v497, %v497
    %v600 = vmul.f32 %v498, %v498
    %v601 = vmul.f32 %v499, %v499
    %v602 = vmul.f32 %v500, %v500
    %v603 = vmul.f32 %v501, %v501
    %v604 = vmul.f32 %v502, %v502
    %v605 = vmul.f32 %v503, %v503
    %v606 = vmul.f32 %v504, %v504
    %v607 = vmul.f32 %v505, %v505
    %v608 = vmul.f32 %v506, %v506
    %v609 = vmul.f32 %v507, %v507
    %v610 = vmul.f32 %v508, %v508
    %v611 = vmul.f32 %v509, %v509
    %v612 = vmul.f32 %v510, %v510
    %v613 = vmul.f32 %v511, %v511
    %v614 = vmul.f32 %v512, %v512
    %v615 = vmul.f32 %v513, %v513
    %v616 = vmul.f32 %v514, %v514
    %v617 = vmul.f32 %v515, %v515
    %v618 = vmul.f32 %v516, %v516
    %v619 = vmul.f32 %v517, %v517
    %v620 = vmul.f32 %v518, %v518
    %v621 = vmul.f32 %v519, %v519
    %v622 = vmul.f32 %v520, %v520
    %v623 = vmul.f32 %v521, %v521
    %v624 = vmul.f32 %v522, %v522
    %v625 = vmul.f32 %v523, %v523
    %v626 = vmul.f32 %v524, %v524
    %v627 = vmul.f32 %v525, %v525
    %v628 = vmul.f32 %v526, %v526
    %v629 = vmul.f32 %v527, %v527
    %v630 = vmul.f32 %v528, %v528
    %v631 = vmul.f32 %v529, %v529
    %v632 = vmul.f32 %v530, %v530
    %v633 = vmul.f32 %v531, %v531
    %v634 = vmul.f32 %v532, %v532
    %v635 = vmul.f32 %v533, %v533
    %v636 = vmul.f32 %v534, %v534
    %v637 = vmul.f32 %v535, %v535
    %v638 = vmul.f32 %v536, %v536
    %v639 = vmul.f32 %v537, %v537
    %v640 = vmul.f32 %v538, %v538
    %v641 = vmul.f32 %v539, %v539
    %v642 = vmul.f32 %v540, %v540
    %v643 = vmul.f32 %v541, %v541
    %v644 = vmul.f32 %v542, %v542
    %v645 = vmul.f32 %v543, %v543
    %v646 = vmul.f32 %v544, %v544
    %v647 = vmul.f32 %v545, %v545
    %v648 = vmul.f32 %v546, %v546
    %v649 = vmul.f32 %v547, %v547
    %v650 = vmul.f32 %v548, %v548
    %v651 = vmul.f32 %v549, %v549
    %v652 = vmul.f32 %v550, %v550
    %v653 = vmul.f32 %v551, %v551
    %v654 = vmul.f32 %v552, %v552
    %v655 = vmul.f32 %v553, %v553
    %v656 = vmul.f32 %v554, %v554
    %v657 = vmul.f32 %v555, %v555
    %v658 = vmul.f32 %v556, %v556
    %v659 = vmul.f32 %v557, %v557
    %v660 = vmul.f32 %v558, %v558
    %v661 = vmul.f32 %v559, %v559
    %v662 = vmul.f32 %v560, %v560
    %v663 = vmul.f32 %v561, %v561
    %v664 = vmul.f32 %v562, %v562
    %v665 = vmul.f32 %v563, %v563
    %v666 = vmul.f32 %v564, %v564
    %v667 = vmul.f32 %v565, %v565
    %v668 = vmul.f32 %v566, %v566
    %v669 = vmul.f32 %v567, %v567
    %v670 = vmul.f32 %v568, %v568
    %v671 = vmul.f32 %v569, %v569
    %v672 = vmul.f32 %v570, %v570
    %v673 = vmul.f32 %v571, %v571
    %v674 = vmul.f32 %v572, %v572
    %v675 = vmul.f32 %v573, %v573
    %v676 = vmul.f32 %v574, %v574
    %v677 = vmul.f32 %v575, %v575
    %v678 = vmul.f32 %v576, %v576
    %v679 = vmul.f32 %v577, %v577
    %v680 = vmul.f32 %v578, %v578
    %v681 = vmul.f32 %v579, %v579
    %v682 = vmul.f32 %v580, %v580
    %v683 = vmul.f32 %v581, %v581
    %v684 = vmul.f32 %v582, %v582
    %v685 = vmul.f32 %v583, %v583
    %v686 = vmul.f32 %v584, %v584
    %v687 = vmul.f32 %v585, %v585
    %v688 = vmul.f32 %v586, %v586
    %v689 = vmul.f32 %v587, %v587
    %v690 = vmul.f32 %v588, %v588
    %v691 = vld [vmem:[#allocation2] sm:$0xff]
    %v692 = vadd.f32 %v589, %v590
    %v693 = vadd.f32 %v692, %v591
    %v694 = vadd.f32 %v693, %v592
    %v695 = vadd.f32 %v694, %v593
    %v696 = vadd.f32 %v695, %v594
    %v697 = vadd.f32 %v696, %v595
    %v698 = vadd.f32 %v697, %v596
    %v699 = vadd.f32 %v698, %v597
    %v700 = vadd.f32 %v699, %v598
    %v701 = vadd.f32 %v700, %v599
    %v702 = vadd.f32 %v701, %v600
    %v703 = vadd.f32 %v702, %v601
    %v704 = vadd.f32 %v703, %v602
    %v705 = vadd.f32 %v704, %v603
    %v706 = vadd.f32 %v705, %v604
    %v707 = vadd.f32 %v706, %v605
    %v708 = vadd.f32 %v707, %v606
    %v709 = vadd.f32 %v708, %v607
    %v710 = vadd.f32 %v709, %v608
    %v711 = vadd.f32 %v710, %v609
    %v712 = vadd.f32 %v711, %v610
    %v713 = vadd.f32 %v712, %v611
    %v714 = vadd.f32 %v713, %v612
    %v715 = vadd.f32 %v714, %v613
    %v716 = vadd.f32 %v715, %v614
    %v717 = vadd.f32 %v716, %v615
    %v718 = vadd.f32 %v717, %v616
    %v719 = vadd.f32 %v718, %v617
    %v720 = vadd.f32 %v719, %v618
    %v721 = vadd.f32 %v720, %v619
    %v722 = vadd.f32 %v721, %v620
    %v723 = vadd.f32 %v722, %v621
    %v724 = vadd.f32 %v723, %v622
    %v725 = vadd.f32 %v724, %v623
    %v726 = vadd.f32 %v725, %v624
    %v727 = vadd.f32 %v726, %v625
    %v728 = vadd.f32 %v727, %v626
    %v729 = vadd.f32 %v728, %v627
    %v730 = vadd.f32 %v729, %v628
    %v731 = vadd.f32 %v730, %v629
    %v732 = vadd.f32 %v731, %v630
    %v733 = vadd.f32 %v732, %v631
    %v734 = vadd.f32 %v733, %v632
    %v735 = vadd.f32 %v734, %v633
    %v736 = vadd.f32 %v735, %v634
    %v737 = vadd.f32 %v736, %v635
    %v738 = vadd.f32 %v737, %v636
    %v739 = vadd.f32 %v738, %v637
    %v740 = vadd.f32 %v739, %v638
    %v741 = vadd.f32 %v740, %v639
    %v742 = vadd.f32 %v741, %v640
    %v743 = vadd.f32 %v742, %v641
    %v744 = vadd.f32 %v743, %v642
    %v745 = vadd.f32 %v744, %v643
    %v746 = vadd.f32 %v745, %v644
    %v747 = vadd.f32 %v746, %v645
    %v748 = vadd.f32 %v747, %v646
    %v749 = vadd.f32 %v748, %v647
    %v750 = vadd.f32 %v749, %v648
    %v751 = vadd.f32 %v750, %v649
    %v752 = vadd.f32 %v751, %v650
    %v753 = vadd.f32 %v752, %v651
    %v754 = vadd.f32 %v753, %v652
    %v755 = vadd.f32 %v754, %v653
    %v756 = vadd.f32 %v755, %v654
    %v757 = vadd.f32 %v756, %v655
    %v758 = vadd.f32 %v757, %v656
    %v759 = vadd.f32 %v758, %v657
    %v760 = vadd.f32 %v759, %v658
    %v761 = vadd.f32 %v760, %v659
    %v762 = vadd.f32 %v761, %v660
    %v763 = vadd.f32 %v762, %v661
    %v764 = vadd.f32 %v763, %v662
    %v765 = vadd.f32 %v764, %v663
    %v766 = vadd.f32 %v765, %v664
    %v767 = vadd.f32 %v766, %v665
    %v768 = vadd.f32 %v767, %v666
    %v769 = vadd.f32 %v768, %v667
    %v770 = vadd.f32 %v769, %v668
    %v771 = vadd.f32 %v770, %v669
    %v772 = vadd.f32 %v771, %v670
    %v773 = vadd.f32 %v772, %v671
    %v774 = vadd.f32 %v773, %v672
    %v775 = vadd.f32 %v774, %v673
    %v776 = vadd.f32 %v775, %v674
    %v777 = vadd.f32 %v776, %v675
    %v778 = vadd.f32 %v777, %v676
    %v779 = vadd.f32 %v778, %v677
    %v780 = vadd.f32 %v779, %v678
    %v781 = vadd.f32 %v780, %v679
    %v782 = vadd.f32 %v781, %v680
    %v783 = vadd.f32 %v782, %v681
    %v784 = vadd.f32 %v783, %v682
    %v785 = vadd.f32 %v784, %v683
    %v786 = vadd.f32 %v785, %v684
    %v787 = vadd.f32 %v786, %v685
    %v788 = vadd.f32 %v787, %v686
    %v789 = vadd.f32 %v788, %v687
    %v790 = vadd.f32 %v789, %v688
    %v791 = vadd.f32 %v790, %v689
    %v792 = vadd.f32 %v791, %v690
    %v793 = vadd.f32 %v691, %v792
    %794 = vst [vmem:[#allocation2] sm:$0xff] %v793
    // Predicated region
    $region30: #{tpu_custom_call.1} parent=1 // pred_check
      %p795 = pneg %p74
    $region31: #{tpu_custom_call.1} parent=1 // pred_check_branch
      %797 = sbr.rel (%p795) target = $region33
    $region32: #{tpu_custom_call.1} parent=1 // pred_region
      %v798 = vld [vmem:[#allocation2] sm:$0xff]
      %799 = vst [vmem:[#allocation9] sm:$0xff] %v798
    $region33: #{tpu_custom_call.1} parent=1 // pred_fallthru
      _
    // Predicated region
    $region34: #{tpu_custom_call.1} parent=1 // pred_check
      _
    $region35: #{tpu_custom_call.1} parent=1 // pred_check_branch
      %801 = sbr.rel (0) target = $region37
    $region36: #{tpu_custom_call.1} parent=1 // pred_region
      %s803 = ssub.s32 128, 128
      %804 = vsyncadd [#allocation5], %s803
      %s806 = sshll.u32 [#allocation9], 4
      %s807 = int_to_ptr.vmem [resolvable:$true] %s806
      %809 = dma.vmem_to_hbm [thread:$0]  %s807, 128, %s3, [#allocation5]
    $region37: #{tpu_custom_call.1} parent=1 // pred_fallthru
      _
    // Predicated region
    $region38: #{tpu_custom_call.1} parent=1 // pred_check
      _
    $region39: #{tpu_custom_call.1} parent=1 // pred_check_branch
      %811 = sbr.rel (0) target = $region41
    $region40: #{tpu_custom_call.1} parent=1 // pred_region
      %812 = dma.done [#allocation5], 128
    $region41: #{tpu_custom_call.1} parent=1 // pred_fallthru
      _
    %813 = vsyncpa [#allocation4], 1
    %814 = vsyncpa [#allocation7], 1
    %815 = vsyncpa [#allocation5], 1

</llo_original>
